<compile_context>
chip_gen: v7x
topology: tpu7x:2x2x1
jax: 0.10.0
libtpu: 0.0.40
codegen_flags: <defaults>
</compile_context>

<pallas_src>
import functools

import jax
import jax.numpy as jnp
from jax.experimental import pallas as pl
from jax.experimental.pallas import tpu as pltpu


_VMEM = pl.BlockSpec(memory_space=pltpu.MemorySpace.VMEM)


def _round_up(x, m):
    return ((x + m - 1) // m) * m


def _pad2(a, rows, cols):
    return jnp.pad(a, ((0, rows - a.shape[0]), (0, cols - a.shape[1])))


# --------------------------- fused Pallas kernel --------------------------- #

def _fused_forward_kernel(x_ref, a_ref, p_ref,
                          enc_w_ref, enc_b_ref,
                          conv_w_ref, conv_b_ref,
                          out_w_ref, out_b_ref,
                          o_ref, *, num_layers):
    """Entire LinearGraph forward in one kernel invocation.

    enc Linear -> [GCNConv + ReLU] x num_layers -> global_mean_pool -> out Linear.
    Matmul inputs are bf16, accumulation is f32 on the MXU.
    """
    f32 = jnp.float32
    bf16 = jnp.bfloat16

    # enc: h = x @ W_enc + b_enc                                  [Np, Hp] f32
    h = jnp.dot(x_ref[...], enc_w_ref[...], preferred_element_type=f32)
    h = h + enc_b_ref[...]

    # A_hat loaded once (stays resident in vregs/VMEM), reused by every GCN layer.
    a_hat = a_ref[...]                                            # [Np, Np] bf16
    for layer in range(num_layers):                               # static unroll
        w = conv_w_ref[layer]                                     # [Hp, Hp] bf16
        b = conv_b_ref[layer]                                     # [1, Hp]  f32
        # GCNConv (PyG default: add_self_loops + sym-norm + bias):
        #   y = relu( A_hat @ (h @ W) + b )
        xw = jnp.dot(h.astype(bf16), w, preferred_element_type=f32)
        h = jnp.dot(a_hat, xw.astype(bf16), preferred_element_type=f32) + b
        h = jnp.maximum(h, 0.0)

    # global_mean_pool: pooled = P @ h  (row g of P = mask(batch==g)/|V_g|)
    pooled = jnp.dot(p_ref[...], h.astype(bf16), preferred_element_type=f32)

    # TODO(synk): F.dropout(p=0.5, training=self.training) is identity in eval mode; omitted.

    # out: y = pooled @ W_out + b_out
    y = jnp.dot(pooled.astype(bf16), out_w_ref[...], preferred_element_type=f32)
    o_ref[...] = (y + out_b_ref[...]).astype(o_ref.dtype)


# ------------------------------- JAX glue ---------------------------------- #

def build_gcn_norm_adj(edge_index, num_nodes):
    """Dense A_hat = D^-1/2 (A + I) D^-1/2 (PyG gcn_norm with self loops)."""
    src, dst = edge_index[0], edge_index[1]
    a = jnp.zeros((num_nodes, num_nodes), jnp.float32).at[dst, src].add(1.0)
    a = a + jnp.eye(num_nodes, dtype=jnp.float32)
    deg = a.sum(axis=1)
    d_inv_sqrt = jnp.where(deg > 0, 1.0 / jnp.sqrt(deg), 0.0)
    return d_inv_sqrt[:, None] * a * d_inv_sqrt[None, :]


def build_mean_pool_matrix(batch, num_graphs):
    onehot = (batch[None, :] == jnp.arange(num_graphs)[:, None]).astype(jnp.float32)
    counts = onehot.sum(axis=1, keepdims=True)
    return onehot / jnp.maximum(counts, 1.0)


def init_params(key, in_feat, num_class, hidden_dim, layers=2):
    keys = jax.random.split(key, 2 + layers)
    scale = 0.1
    conv_w = jnp.stack([
        scale * jax.random.normal(keys[2 + i], (hidden_dim, hidden_dim), jnp.float32)
        for i in range(layers)
    ])
    return {
        "enc_w": scale * jax.random.normal(keys[0], (in_feat, hidden_dim), jnp.float32),
        "enc_b": jnp.zeros((hidden_dim,), jnp.float32),
        "out_w": scale * jax.random.normal(keys[1], (hidden_dim, num_class), jnp.float32),
        "out_b": jnp.zeros((num_class,), jnp.float32),
        "conv_w": conv_w,                                        # [L, H, H]
        "conv_b": jnp.zeros((layers, hidden_dim), jnp.float32),  # [L, H]
    }


@functools.partial(jax.jit, static_argnames=("num_graphs",))
def linear_graph_forward(params, x, edge_index, batch, num_graphs):
    num_nodes, in_feat = x.shape
    hidden = params["enc_w"].shape[1]
    num_class = params["out_w"].shape[1]
    num_layers = params["conv_w"].shape[0]

    # Lane/sublane-dense padded sizes.
    n_p = _round_up(num_nodes, 128)     # node dim (rows of h, both dims of A_hat)
    f_p = _round_up(in_feat, 128)
    h_p = _round_up(hidden, 128)
    c_p = _round_up(num_class, 128)
    g_p = _round_up(num_graphs, 16)     # bf16 pooling matrix needs 16 sublanes

    a_hat = build_gcn_norm_adj(edge_index, num_nodes)        # [N, N] f32
    pool = build_mean_pool_matrix(batch, num_graphs)         # [G, N] f32

    bf16 = jnp.bfloat16
    x_p = _pad2(x, n_p, f_p).astype(bf16)
    a_p = _pad2(a_hat, n_p, n_p).astype(bf16)
    p_p = _pad2(pool, g_p, n_p).astype(bf16)

    enc_w = _pad2(params["enc_w"], f_p, h_p).astype(bf16)
    enc_b = _pad2(params["enc_b"][None, :], 1, h_p)                       # f32
    conv_w = jnp.pad(params["conv_w"],
                     ((0, 0), (0, h_p - hidden), (0, h_p - hidden))).astype(bf16)
    conv_b = jnp.pad(params["conv_b"][:, None, :],
                     ((0, 0), (0, 0), (0, h_p - hidden)))                 # f32 [L,1,Hp]
    out_w = _pad2(params["out_w"], h_p, c_p).astype(bf16)
    out_b = _pad2(params["out_b"][None, :], 1, c_p)                       # f32

    out_padded = pl.pallas_call(
        functools.partial(_fused_forward_kernel, num_layers=int(num_layers)),
        out_shape=jax.ShapeDtypeStruct((g_p, c_p), jnp.float32),
        in_specs=[_VMEM] * 9,
        out_specs=_VMEM,
    )(x_p, a_p, p_p, enc_w, enc_b, conv_w, conv_b, out_w, out_b)

    # TODO(synk): for large graphs (N >~ a few thousand) the [N,N] A_hat no longer fits
    # VMEM; that regime needs a per-layer tiled kernel (grid over node-row x node-K
    # tiles, f32 accumulator scratch, "parallel"/"arbitrary" dimension_semantics).
    return out_padded[:num_graphs, :num_class]


# --------------------------------- main ------------------------------------ #

if __name__ == "__main__":
    in_feat, num_class, hidden_dim, layers = 8, 4, 32, 2
    num_graphs, nodes_per_graph = 2, 8
    num_nodes = num_graphs * nodes_per_graph

    key = jax.random.PRNGKey(0)
    k_x, k_p = jax.random.split(key)

    # Node features [N, in_feat]
    x = jax.random.normal(k_x, (num_nodes, in_feat), jnp.float32)

    # Two ring graphs of 8 nodes each, symmetric (undirected) edges -> edge_index [2, 32]
    srcs, dsts = [], []
    for g in range(num_graphs):
        base = g * nodes_per_graph
        for i in range(nodes_per_graph):
            u = base + i
            v = base + (i + 1) % nodes_per_graph
            srcs += [u, v]
            dsts += [v, u]
    edge_index = jnp.array([srcs, dsts], dtype=jnp.int32)

    # batch vector [N]
    batch = jnp.repeat(jnp.arange(num_graphs, dtype=jnp.int32), nodes_per_graph)

    params = init_params(k_p, in_feat, num_class, hidden_dim, layers)

    out = linear_graph_forward(params, x, edge_index, batch, num_graphs)
    out = jax.block_until_ready(out)
    assert out.shape == (num_graphs, num_class)
    assert bool(jnp.all(jnp.isfinite(out)))
    print("KERNEL_OK")
</pallas_src>

<mosaic_0001>
module attributes {stable_mosaic.version = 11 : i64} {
  func.func private @main(%arg0: i32) attributes {dimension_semantics = [#tpu.dimension_semantics<core_parallel>], iteration_bounds = array<i64: 2>, tpu.core_type = #tpu.core_type<sc_scalar_subcore>, window_params = []} {
    return
  }
}

module attributes {stable_mosaic.version = 11 : i64} {
  func.func private @main(%arg0: i32) attributes {dimension_semantics = [#tpu.dimension_semantics<core_parallel>], iteration_bounds = array<i64: 2>, tpu.core_type = #tpu.core_type<sc_scalar_subcore>, window_params = []} {
    return
  }
}

module attributes {stable_mosaic.version = 11 : i64} {
  func.func @_fused_forward_kernel(%arg0: memref<128x128xbf16, #tpu.memory_space<vmem>>, %arg1: memref<128x128xbf16, #tpu.memory_space<vmem>>, %arg2: memref<16x128xbf16, #tpu.memory_space<vmem>>, %arg3: memref<128x128xbf16, #tpu.memory_space<vmem>>, %arg4: memref<1x128xf32, #tpu.memory_space<vmem>>, %arg5: memref<2x128x128xbf16, #tpu.memory_space<vmem>>, %arg6: memref<2x1x128xf32, #tpu.memory_space<vmem>>, %arg7: memref<128x128xbf16, #tpu.memory_space<vmem>>, %arg8: memref<1x128xf32, #tpu.memory_space<vmem>>, %arg9: memref<16x128xf32, #tpu.memory_space<vmem>>) attributes {dimension_semantics = [], scalar_prefetch = 0 : i64, scratch_operands = 0 : i64, tpu.core_type = #tpu.core_type<tc>} {
    %c0 = arith.constant 0 : index
    %c0_0 = arith.constant 0 : index
    %0 = vector.load %arg0[%c0, %c0_0] : memref<128x128xbf16, #tpu.memory_space<vmem>>, vector<128x128xbf16>
    %c0_1 = arith.constant 0 : index
    %c0_2 = arith.constant 0 : index
    %1 = vector.load %arg3[%c0_1, %c0_2] : memref<128x128xbf16, #tpu.memory_space<vmem>>, vector<128x128xbf16>
    %cst = arith.constant dense<0.000000e+00> : vector<128x128xf32>
    %2 = tpu.matmul %0, %1, %cst {dimension_numbers = #tpu.dot_dimension_numbers<[1], [0], [0], [1], [0, 0, 1, 1], [], []>} : vector<128x128xbf16>, vector<128x128xbf16>, vector<128x128xf32> -> vector<128x128xf32>
    %c0_3 = arith.constant 0 : index
    %c0_4 = arith.constant 0 : index
    %3 = vector.load %arg4[%c0_3, %c0_4] : memref<1x128xf32, #tpu.memory_space<vmem>>, vector<1x128xf32>
    %4 = vector.broadcast %3 : vector<1x128xf32> to vector<128x128xf32>
    %5 = arith.addf %2, %4 : vector<128x128xf32>
    %c0_5 = arith.constant 0 : index
    %c0_6 = arith.constant 0 : index
    %6 = vector.load %arg1[%c0_5, %c0_6] : memref<128x128xbf16, #tpu.memory_space<vmem>>, vector<128x128xbf16>
    %c0_7 = arith.constant 0 : index
    %c0_8 = arith.constant 0 : index
    %c0_9 = arith.constant 0 : index
    %7 = vector.load %arg5[%c0_7, %c0_8, %c0_9] : memref<2x128x128xbf16, #tpu.memory_space<vmem>>, vector<1x128x128xbf16>
    %8 = vector.shape_cast %7 : vector<1x128x128xbf16> to vector<128x128xbf16>
    %c0_10 = arith.constant 0 : index
    %c0_11 = arith.constant 0 : index
    %c0_12 = arith.constant 0 : index
    %9 = vector.load %arg6[%c0_10, %c0_11, %c0_12] : memref<2x1x128xf32, #tpu.memory_space<vmem>>, vector<1x1x128xf32>
    %10 = vector.shape_cast %9 : vector<1x1x128xf32> to vector<1x128xf32>
    %11 = arith.truncf %5 : vector<128x128xf32> to vector<128x128xbf16>
    %cst_13 = arith.constant dense<0.000000e+00> : vector<128x128xf32>
    %12 = tpu.matmul %11, %8, %cst_13 {dimension_numbers = #tpu.dot_dimension_numbers<[1], [0], [0], [1], [0, 0, 1, 1], [], []>} : vector<128x128xbf16>, vector<128x128xbf16>, vector<128x128xf32> -> vector<128x128xf32>
    %13 = arith.truncf %12 : vector<128x128xf32> to vector<128x128xbf16>
    %cst_14 = arith.constant dense<0.000000e+00> : vector<128x128xf32>
    %14 = tpu.matmul %6, %13, %cst_14 {dimension_numbers = #tpu.dot_dimension_numbers<[1], [0], [0], [1], [0, 0, 1, 1], [], []>} : vector<128x128xbf16>, vector<128x128xbf16>, vector<128x128xf32> -> vector<128x128xf32>
    %15 = vector.broadcast %10 : vector<1x128xf32> to vector<128x128xf32>
    %16 = arith.addf %14, %15 : vector<128x128xf32>
    %cst_15 = arith.constant 0.000000e+00 : f32
    %17 = vector.broadcast %cst_15 : f32 to vector<128x128xf32>
    %18 = arith.maximumf %16, %17 : vector<128x128xf32>
    %c1 = arith.constant 1 : index
    %c0_16 = arith.constant 0 : index
    %c0_17 = arith.constant 0 : index
    %19 = vector.load %arg5[%c1, %c0_16, %c0_17] : memref<2x128x128xbf16, #tpu.memory_space<vmem>>, vector<1x128x128xbf16>
    %20 = vector.shape_cast %19 : vector<1x128x128xbf16> to vector<128x128xbf16>
    %c1_18 = arith.constant 1 : index
    %c0_19 = arith.constant 0 : index
    %c0_20 = arith.constant 0 : index
    %21 = vector.load %arg6[%c1_18, %c0_19, %c0_20] : memref<2x1x128xf32, #tpu.memory_space<vmem>>, vector<1x1x128xf32>
    %22 = vector.shape_cast %21 : vector<1x1x128xf32> to vector<1x128xf32>
    %23 = arith.truncf %18 : vector<128x128xf32> to vector<128x128xbf16>
    %cst_21 = arith.constant dense<0.000000e+00> : vector<128x128xf32>
    %24 = tpu.matmul %23, %20, %cst_21 {dimension_numbers = #tpu.dot_dimension_numbers<[1], [0], [0], [1], [0, 0, 1, 1], [], []>} : vector<128x128xbf16>, vector<128x128xbf16>, vector<128x128xf32> -> vector<128x128xf32>
    %25 = arith.truncf %24 : vector<128x128xf32> to vector<128x128xbf16>
    %cst_22 = arith.constant dense<0.000000e+00> : vector<128x128xf32>
    %26 = tpu.matmul %6, %25, %cst_22 {dimension_numbers = #tpu.dot_dimension_numbers<[1], [0], [0], [1], [0, 0, 1, 1], [], []>} : vector<128x128xbf16>, vector<128x128xbf16>, vector<128x128xf32> -> vector<128x128xf32>
    %27 = vector.broadcast %22 : vector<1x128xf32> to vector<128x128xf32>
    %28 = arith.addf %26, %27 : vector<128x128xf32>
    %cst_23 = arith.constant 0.000000e+00 : f32
    %29 = vector.broadcast %cst_23 : f32 to vector<128x128xf32>
    %30 = arith.maximumf %28, %29 : vector<128x128xf32>
    %c0_24 = arith.constant 0 : index
    %c0_25 = arith.constant 0 : index
    %31 = vector.load %arg2[%c0_24, %c0_25] : memref<16x128xbf16, #tpu.memory_space<vmem>>, vector<16x128xbf16>
    %32 = arith.truncf %30 : vector<128x128xf32> to vector<128x128xbf16>
    %cst_26 = arith.constant dense<0.000000e+00> : vector<16x128xf32>
    %33 = tpu.matmul %31, %32, %cst_26 {dimension_numbers = #tpu.dot_dimension_numbers<[1], [0], [0], [1], [0, 0, 1, 1], [], []>} : vector<16x128xbf16>, vector<128x128xbf16>, vector<16x128xf32> -> vector<16x128xf32>
    %34 = arith.truncf %33 : vector<16x128xf32> to vector<16x128xbf16>
    %c0_27 = arith.constant 0 : index
    %c0_28 = arith.constant 0 : index
    %35 = vector.load %arg7[%c0_27, %c0_28] : memref<128x128xbf16, #tpu.memory_space<vmem>>, vector<128x128xbf16>
    %cst_29 = arith.constant dense<0.000000e+00> : vector<16x128xf32>
    %36 = tpu.matmul %34, %35, %cst_29 {dimension_numbers = #tpu.dot_dimension_numbers<[1], [0], [0], [1], [0, 0, 1, 1], [], []>} : vector<16x128xbf16>, vector<128x128xbf16>, vector<16x128xf32> -> vector<16x128xf32>
    %c0_30 = arith.constant 0 : index
    %c0_31 = arith.constant 0 : index
    %37 = vector.load %arg8[%c0_30, %c0_31] : memref<1x128xf32, #tpu.memory_space<vmem>>, vector<1x128xf32>
    %38 = vector.broadcast %37 : vector<1x128xf32> to vector<16x128xf32>
    %39 = arith.addf %36, %38 : vector<16x128xf32>
    %c0_32 = arith.constant 0 : index
    %c0_33 = arith.constant 0 : index
    %40 = vector.load %arg9[%c0_32, %c0_33] : memref<16x128xf32, #tpu.memory_space<vmem>>, vector<16x128xf32>
    tpu.vector_store %arg9[%c0_32, %c0_33], %39 {strides = array<i32>} : memref<16x128xf32, #tpu.memory_space<vmem>>, vector<16x128xf32>,
    return
  }
}

</mosaic_0001>

<llo_original>
// kernel: linear_graph_forward.1
$region0: #{linear_graph_forward.1}
  #allocation0 [shape = 'u32[]', space=smem, size = 0x4, offset = 0x4, fixed_abs, tag = 'smem constant byte address 0x4 - core index']
  #allocation1 [shape = 'u32[144,128]{1,0:T(1,128)}', space=vmem, size = 0x12000, scoped, tag = 'internal scratch']
  %s0 = inlined_call_operand.vmem [shape: bf16[128,128], index: 0, kind: input, shape index: {}]
  %s1 = inlined_call_operand.vmem [shape: bf16[128,128], index: 1, kind: input, shape index: {}]
  %s2 = inlined_call_operand.vmem [shape: bf16[16,128], index: 2, kind: input, shape index: {}]
  %s3 = inlined_call_operand.vmem [shape: bf16[128,128], index: 3, kind: input, shape index: {}]
  %s4 = inlined_call_operand.vmem [shape: f32[1,128], index: 4, kind: input, shape index: {}]
  %s5 = inlined_call_operand.vmem [shape: bf16[2,128,128], index: 5, kind: input, shape index: {}]
  %s6 = inlined_call_operand.vmem [shape: f32[2,1,128], index: 6, kind: input, shape index: {}]
  %s7 = inlined_call_operand.vmem [shape: bf16[128,128], index: 7, kind: input, shape index: {}]
  %s8 = inlined_call_operand.vmem [shape: f32[1,128], index: 8, kind: input, shape index: {}]
  %s9 = inlined_call_operand.vmem [shape: f32[16,128], index: 9, kind: output, shape index: {}]
  %s10 = sld [smem:[#allocation0]]
  $region46: #{linear_graph_forward.1} parent=0
    _
  %s12 = ssub.s32 1, %s10
  %s13 = scalar_select 0, %s12, %s10
  // Predicated region
  $region2: #{linear_graph_forward.1} parent=0 // pred_check
    _
  $region3: #{linear_graph_forward.1} parent=0 // pred_check_branch
    %15 = sbr.rel (0) target = $region5
  $region4: #{linear_graph_forward.1} parent=0 // pred_region
    _
  $region5: #{linear_graph_forward.1} parent=0 // pred_fallthru
    _
  // Predicated region
  $region6: #{linear_graph_forward.1} parent=0 // pred_check
    _
  $region7: #{linear_graph_forward.1} parent=0 // pred_check_branch
    %17 = sbr.rel (0) target = $region9
  $region8: #{linear_graph_forward.1} parent=0 // pred_region
    _
  $region9: #{linear_graph_forward.1} parent=0 // pred_fallthru
    _
  // Predicated region
  $region10: #{linear_graph_forward.1} parent=0 // pred_check
    _
  $region11: #{linear_graph_forward.1} parent=0 // pred_check_branch
    %19 = sbr.rel (0) target = $region13
  $region12: #{linear_graph_forward.1} parent=0 // pred_region
    _
  $region13: #{linear_graph_forward.1} parent=0 // pred_fallthru
    _
  // Predicated region
  $region14: #{linear_graph_forward.1} parent=0 // pred_check
    _
  $region15: #{linear_graph_forward.1} parent=0 // pred_check_branch
    %21 = sbr.rel (0) target = $region17
  $region16: #{linear_graph_forward.1} parent=0 // pred_region
    _
  $region17: #{linear_graph_forward.1} parent=0 // pred_fallthru
    _
  // Predicated region
  $region18: #{linear_graph_forward.1} parent=0 // pred_check
    _
  $region19: #{linear_graph_forward.1} parent=0 // pred_check_branch
    %23 = sbr.rel (0) target = $region21
  $region20: #{linear_graph_forward.1} parent=0 // pred_region
    _
  $region21: #{linear_graph_forward.1} parent=0 // pred_fallthru
    _
  // Predicated region
  $region22: #{linear_graph_forward.1} parent=0 // pred_check
    _
  $region23: #{linear_graph_forward.1} parent=0 // pred_check_branch
    %25 = sbr.rel (0) target = $region25
  $region24: #{linear_graph_forward.1} parent=0 // pred_region
    _
  $region25: #{linear_graph_forward.1} parent=0 // pred_fallthru
    _
  // Predicated region
  $region26: #{linear_graph_forward.1} parent=0 // pred_check
    _
  $region27: #{linear_graph_forward.1} parent=0 // pred_check_branch
    %27 = sbr.rel (0) target = $region29
  $region28: #{linear_graph_forward.1} parent=0 // pred_region
    _
  $region29: #{linear_graph_forward.1} parent=0 // pred_fallthru
    _
  // Predicated region
  $region30: #{linear_graph_forward.1} parent=0 // pred_check
    _
  $region31: #{linear_graph_forward.1} parent=0 // pred_check_branch
    %29 = sbr.rel (0) target = $region33
  $region32: #{linear_graph_forward.1} parent=0 // pred_region
    _
  $region33: #{linear_graph_forward.1} parent=0 // pred_fallthru
    _
  // Predicated region
  $region34: #{linear_graph_forward.1} parent=0 // pred_check
    _
  $region35: #{linear_graph_forward.1} parent=0 // pred_check_branch
    %31 = sbr.rel (0) target = $region37
  $region36: #{linear_graph_forward.1} parent=0 // pred_region
    _
  $region37: #{linear_graph_forward.1} parent=0 // pred_fallthru
    _
  %v33 = vld [vmem:[%s0] sm:$0xf]
  %v34 = vld [vmem:[%s0 + $0x4] sm:$0xf]
  %v35 = vld [vmem:[%s0 + $0x8] sm:$0xf]
  %v36 = vld [vmem:[%s0 + $0xc] sm:$0xf]
  %v37 = vld [vmem:[%s0 + $0x10] sm:$0xf]
  %v38 = vld [vmem:[%s0 + $0x14] sm:$0xf]
  %v39 = vld [vmem:[%s0 + $0x18] sm:$0xf]
  %v40 = vld [vmem:[%s0 + $0x1c] sm:$0xf]
  %v41 = vld [vmem:[%s0 + $0x20] sm:$0xf]
  %v42 = vld [vmem:[%s0 + $0x24] sm:$0xf]
  %v43 = vld [vmem:[%s0 + $0x28] sm:$0xf]
  %v44 = vld [vmem:[%s0 + $0x2c] sm:$0xf]
  %v45 = vld [vmem:[%s0 + $0x30] sm:$0xf]
  %v46 = vld [vmem:[%s0 + $0x34] sm:$0xf]
  %v47 = vld [vmem:[%s0 + $0x38] sm:$0xf]
  %v48 = vld [vmem:[%s0 + $0x3c] sm:$0xf]
  %v49 = vld [vmem:[%s3] sm:$0xf]
  %v50 = vld [vmem:[%s3 + $0x4] sm:$0xf]
  %v51 = vld [vmem:[%s3 + $0x8] sm:$0xf]
  %v52 = vld [vmem:[%s3 + $0xc] sm:$0xf]
  %v53 = vld [vmem:[%s3 + $0x10] sm:$0xf]
  %v54 = vld [vmem:[%s3 + $0x14] sm:$0xf]
  %v55 = vld [vmem:[%s3 + $0x18] sm:$0xf]
  %v56 = vld [vmem:[%s3 + $0x1c] sm:$0xf]
  %v57 = vld [vmem:[%s3 + $0x20] sm:$0xf]
  %v58 = vld [vmem:[%s3 + $0x24] sm:$0xf]
  %v59 = vld [vmem:[%s3 + $0x28] sm:$0xf]
  %v60 = vld [vmem:[%s3 + $0x2c] sm:$0xf]
  %v61 = vld [vmem:[%s3 + $0x30] sm:$0xf]
  %v62 = vld [vmem:[%s3 + $0x34] sm:$0xf]
  %v63 = vld [vmem:[%s3 + $0x38] sm:$0xf]
  %v64 = vld [vmem:[%s3 + $0x3c] sm:$0xf]
  %v65 = vld [vmem:[%s4] sm:$0x1]
  %v67 = vlaneseq
  %v68 = vshrl.u32 %v67, 7
  %v69 = vsub.s32 0, %v68
  %v70 = vrot.slane %v65, %v69
  %v88 = vunpack.c.l.b16 %v33
  %v89 = vunpack.c.l.b16 %v34
  %v90 = vunpack.c.l.b16 %v35
  %v91 = vunpack.c.l.b16 %v36
  %v92 = vunpack.c.l.b16 %v37
  %v93 = vunpack.c.l.b16 %v38
  %v94 = vunpack.c.l.b16 %v39
  %v95 = vunpack.c.l.b16 %v40
  %v96 = vunpack.c.l.b16 %v41
  %v97 = vunpack.c.l.b16 %v42
  %v98 = vunpack.c.l.b16 %v43
  %v99 = vunpack.c.l.b16 %v44
  %v100 = vunpack.c.l.b16 %v45
  %v101 = vunpack.c.l.b16 %v46
  %v102 = vunpack.c.l.b16 %v47
  %v103 = vunpack.c.l.b16 %v48
  %v104 = vpack.c.b16 %v89, %v88
  %v105 = vpack.c.b16 %v91, %v90
  %v106 = vpack.c.b16 %v93, %v92
  %v107 = vpack.c.b16 %v95, %v94
  %v108 = vpack.c.b16 %v97, %v96
  %v109 = vpack.c.b16 %v99, %v98
  %v110 = vpack.c.b16 %v101, %v100
  %v111 = vpack.c.b16 %v103, %v102
  %v136 = vunpack.c.l.b16 %v49
  %v137 = vunpack.c.l.b16 %v50
  %v138 = vunpack.c.l.b16 %v51
  %v139 = vunpack.c.l.b16 %v52
  %v140 = vunpack.c.l.b16 %v53
  %v141 = vunpack.c.l.b16 %v54
  %v142 = vunpack.c.l.b16 %v55
  %v143 = vunpack.c.l.b16 %v56
  %v144 = vunpack.c.l.b16 %v57
  %v145 = vunpack.c.l.b16 %v58
  %v146 = vunpack.c.l.b16 %v59
  %v147 = vunpack.c.l.b16 %v60
  %v148 = vunpack.c.l.b16 %v61
  %v149 = vunpack.c.l.b16 %v62
  %v150 = vunpack.c.l.b16 %v63
  %v151 = vunpack.c.l.b16 %v64
  %v152 = vpack.c.b16 %v137, %v136
  %v153 = vpack.c.b16 %v139, %v138
  %v154 = vpack.c.b16 %v141, %v140
  %v155 = vpack.c.b16 %v143, %v142
  %v156 = vpack.c.b16 %v145, %v144
  %v157 = vpack.c.b16 %v147, %v146
  %v158 = vpack.c.b16 %v149, %v148
  %v159 = vpack.c.b16 %v151, %v150
  %168 = vmatprep.subr.bf16.mxu0 0
  %169 = vmatpush1.bf16.msra.mxu0 %v152
  %170 = vmatprep.subr.bf16.mxu0 0
  %171 = vmatpush1.bf16.msra.mxu0 %v153
  %172 = vmatprep.subr.bf16.mxu0 0
  %173 = vmatpush1.bf16.msra.mxu0 %v154
  %174 = vmatprep.subr.bf16.mxu0 0
  %175 = vmatpush1.bf16.msra.mxu0 %v155
  %176 = vmatprep.subr.bf16.mxu0 0
  %177 = vmatpush1.bf16.msra.mxu0 %v156
  %178 = vmatprep.subr.bf16.mxu0 0
  %179 = vmatpush1.bf16.msra.mxu0 %v157
  %180 = vmatprep.subr.bf16.mxu0 0
  %181 = vmatpush1.bf16.msra.mxu0 %v158
  %182 = vmatprep.subr.bf16.mxu0 0
  %183 = vmatpush1.bf16.msra.mxu0 %v159
  %184 = vmatprep.subr.bf16.mxu0 0
  %185 = vmatpush1.bf16.msra.mxu0 0
  %186 = vmatprep.subr.bf16.mxu0 0
  %187 = vmatpush1.bf16.msra.mxu0 0
  %188 = vmatprep.subr.bf16.mxu0 0
  %189 = vmatpush1.bf16.msra.mxu0 0
  %190 = vmatprep.subr.bf16.mxu0 0
  %191 = vmatpush1.bf16.msra.mxu0 0
  %192 = vmatprep.subr.bf16.mxu0 0
  %193 = vmatpush1.bf16.msra.mxu0 0
  %194 = vmatprep.subr.bf16.mxu0 0
  %195 = vmatpush1.bf16.msra.mxu0 0
  %196 = vmatprep.subr.bf16.mxu0 0
  %197 = vmatpush1.bf16.msra.mxu0 0
  %198 = vmatprep.subr.bf16.mxu0 0
  %199 = vmatpush1.bf16.msra.mxu0 0
  %200 = vmatprep.mubr.bf16.mxu0 0
  %201 = vmatmul.mubr.bf16.gmra.mrb[0].mxu0 %v104
  %v202 = vpop.f32.mrb[0].mxu0
  %v203 = vadd.f32 %v70, %v202
  %v204 = vpop.f32.mrb[0].mxu0
  %v205 = vpop.f32.mrb[0].mxu0
  %v206 = vadd.f32 %v70, %v205
  %v207 = vpop.f32.mrb[0].mxu0
  %208 = vmatprep.mubr.bf16.mxu0 0
  %209 = vmatmul.mubr.bf16.gmra.mrb[0].mxu0 %v105
  %v210 = vpop.f32.mrb[0].mxu0
  %v211 = vadd.f32 %v70, %v210
  %v212 = vpop.f32.mrb[0].mxu0
  %v213 = vpop.f32.mrb[0].mxu0
  %v214 = vadd.f32 %v70, %v213
  %v215 = vpop.f32.mrb[0].mxu0
  %216 = vmatprep.mubr.bf16.mxu0 0
  %217 = vmatmul.mubr.bf16.gmra.mrb[0].mxu0 %v106
  %v218 = vpop.f32.mrb[0].mxu0
  %v219 = vadd.f32 %v70, %v218
  %v220 = vpop.f32.mrb[0].mxu0
  %v221 = vpop.f32.mrb[0].mxu0
  %v222 = vadd.f32 %v70, %v221
  %v223 = vpop.f32.mrb[0].mxu0
  %224 = vmatprep.mubr.bf16.mxu0 0
  %225 = vmatmul.mubr.bf16.gmra.mrb[0].mxu0 %v107
  %v226 = vpop.f32.mrb[0].mxu0
  %v227 = vadd.f32 %v70, %v226
  %v228 = vpop.f32.mrb[0].mxu0
  %v229 = vpop.f32.mrb[0].mxu0
  %v230 = vadd.f32 %v70, %v229
  %v231 = vpop.f32.mrb[0].mxu0
  %232 = vmatprep.mubr.bf16.mxu0 0
  %233 = vmatmul.mubr.bf16.gmra.mrb[0].mxu0 %v108
  %v234 = vpop.f32.mrb[0].mxu0
  %v235 = vadd.f32 %v70, %v234
  %v236 = vpop.f32.mrb[0].mxu0
  %v237 = vpop.f32.mrb[0].mxu0
  %v238 = vadd.f32 %v70, %v237
  %v239 = vpop.f32.mrb[0].mxu0
  %240 = vmatprep.mubr.bf16.mxu0 0
  %241 = vmatmul.mubr.bf16.gmra.mrb[0].mxu0 %v109
  %v242 = vpop.f32.mrb[0].mxu0
  %v243 = vadd.f32 %v70, %v242
  %v244 = vpop.f32.mrb[0].mxu0
  %v245 = vpop.f32.mrb[0].mxu0
  %v246 = vadd.f32 %v70, %v245
  %v247 = vpop.f32.mrb[0].mxu0
  %248 = vmatprep.mubr.bf16.mxu0 0
  %249 = vmatmul.mubr.bf16.gmra.mrb[0].mxu0 %v110
  %v250 = vpop.f32.mrb[0].mxu0
  %v251 = vadd.f32 %v70, %v250
  %v252 = vpop.f32.mrb[0].mxu0
  %v253 = vpop.f32.mrb[0].mxu0
  %v254 = vadd.f32 %v70, %v253
  %v255 = vpop.f32.mrb[0].mxu0
  %256 = vmatprep.mubr.bf16.mxu0 0
  %257 = vmatmul.mubr.bf16.gmra.mrb[0].mxu0 %v111
  %v258 = vpop.f32.mrb[0].mxu0
  %v259 = vadd.f32 %v70, %v258
  %v260 = vpop.f32.mrb[0].mxu0
  %v261 = vpop.f32.mrb[0].mxu0
  %v262 = vadd.f32 %v70, %v261
  %v263 = vpop.f32.mrb[0].mxu0
  %264 = vdwg.mxu0
  %v265 = vld [vmem:[%s1] sm:$0xf]
  %v266 = vld [vmem:[%s1 + $0x4] sm:$0xf]
  %v267 = vld [vmem:[%s1 + $0x8] sm:$0xf]
  %v268 = vld [vmem:[%s1 + $0xc] sm:$0xf]
  %v269 = vld [vmem:[%s1 + $0x10] sm:$0xf]
  %v270 = vld [vmem:[%s1 + $0x14] sm:$0xf]
  %v271 = vld [vmem:[%s1 + $0x18] sm:$0xf]
  %v272 = vld [vmem:[%s1 + $0x1c] sm:$0xf]
  %v273 = vld [vmem:[%s1 + $0x20] sm:$0xf]
  %v274 = vld [vmem:[%s1 + $0x24] sm:$0xf]
  %v275 = vld [vmem:[%s1 + $0x28] sm:$0xf]
  %v276 = vld [vmem:[%s1 + $0x2c] sm:$0xf]
  %v277 = vld [vmem:[%s1 + $0x30] sm:$0xf]
  %v278 = vld [vmem:[%s1 + $0x34] sm:$0xf]
  %v279 = vld [vmem:[%s1 + $0x38] sm:$0xf]
  %v280 = vld [vmem:[%s1 + $0x3c] sm:$0xf]
  %v281 = vld [vmem:[%s5] sm:$0xf]
  %v282 = vld [vmem:[%s5 + $0x4] sm:$0xf]
  %v283 = vld [vmem:[%s5 + $0x8] sm:$0xf]
  %v284 = vld [vmem:[%s5 + $0xc] sm:$0xf]
  %v285 = vld [vmem:[%s5 + $0x10] sm:$0xf]
  %v286 = vld [vmem:[%s5 + $0x14] sm:$0xf]
  %v287 = vld [vmem:[%s5 + $0x18] sm:$0xf]
  %v288 = vld [vmem:[%s5 + $0x1c] sm:$0xf]
  %v289 = vld [vmem:[%s5 + $0x20] sm:$0xf]
  %v290 = vld [vmem:[%s5 + $0x24] sm:$0xf]
  %v291 = vld [vmem:[%s5 + $0x28] sm:$0xf]
  %v292 = vld [vmem:[%s5 + $0x2c] sm:$0xf]
  %v293 = vld [vmem:[%s5 + $0x30] sm:$0xf]
  %v294 = vld [vmem:[%s5 + $0x34] sm:$0xf]
  %v295 = vld [vmem:[%s5 + $0x38] sm:$0xf]
  %v296 = vld [vmem:[%s5 + $0x3c] sm:$0xf]
  %v297 = vld [vmem:[%s6] sm:$0x1]
  %v298 = vpack.c.bf16 %v206, %v203
  %v299 = vpack.c.bf16 %v214, %v211
  %v300 = vpack.c.bf16 %v222, %v219
  %v301 = vpack.c.bf16 %v230, %v227
  %v302 = vpack.c.bf16 %v238, %v235
  %v303 = vpack.c.bf16 %v246, %v243
  %v304 = vpack.c.bf16 %v254, %v251
  %v305 = vpack.c.bf16 %v262, %v259
  %v322 = vunpack.c.l.b16 %v281
  %v323 = vunpack.c.l.b16 %v282
  %v324 = vunpack.c.l.b16 %v283
  %v325 = vunpack.c.l.b16 %v284
  %v326 = vunpack.c.l.b16 %v285
  %v327 = vunpack.c.l.b16 %v286
  %v328 = vunpack.c.l.b16 %v287
  %v329 = vunpack.c.l.b16 %v288
  %v330 = vunpack.c.l.b16 %v289
  %v331 = vunpack.c.l.b16 %v290
  %v332 = vunpack.c.l.b16 %v291
  %v333 = vunpack.c.l.b16 %v292
  %v334 = vunpack.c.l.b16 %v293
  %v335 = vunpack.c.l.b16 %v294
  %v336 = vunpack.c.l.b16 %v295
  %v337 = vunpack.c.l.b16 %v296
  %v338 = vpack.c.b16 %v323, %v322
  %v339 = vpack.c.b16 %v325, %v324
  %v340 = vpack.c.b16 %v327, %v326
  %v341 = vpack.c.b16 %v329, %v328
  %v342 = vpack.c.b16 %v331, %v330
  %v343 = vpack.c.b16 %v333, %v332
  %v344 = vpack.c.b16 %v335, %v334
  %v345 = vpack.c.b16 %v337, %v336
  %354 = vmatprep.subr.bf16.mxu0 0
  %355 = vmatpush1.bf16.msra.mxu0 %v338
  %356 = vmatprep.subr.bf16.mxu0 0
  %357 = vmatpush1.bf16.msra.mxu0 %v339
  %358 = vmatprep.subr.bf16.mxu0 0
  %359 = vmatpush1.bf16.msra.mxu0 %v340
  %360 = vmatprep.subr.bf16.mxu0 0
  %361 = vmatpush1.bf16.msra.mxu0 %v341
  %362 = vmatprep.subr.bf16.mxu0 0
  %363 = vmatpush1.bf16.msra.mxu0 %v342
  %364 = vmatprep.subr.bf16.mxu0 0
  %365 = vmatpush1.bf16.msra.mxu0 %v343
  %366 = vmatprep.subr.bf16.mxu0 0
  %367 = vmatpush1.bf16.msra.mxu0 %v344
  %368 = vmatprep.subr.bf16.mxu0 0
  %369 = vmatpush1.bf16.msra.mxu0 %v345
  %370 = vmatprep.subr.bf16.mxu0 0
  %371 = vmatpush1.bf16.msra.mxu0 0
  %372 = vmatprep.subr.bf16.mxu0 0
  %373 = vmatpush1.bf16.msra.mxu0 0
  %374 = vmatprep.subr.bf16.mxu0 0
  %375 = vmatpush1.bf16.msra.mxu0 0
  %376 = vmatprep.subr.bf16.mxu0 0
  %377 = vmatpush1.bf16.msra.mxu0 0
  %378 = vmatprep.subr.bf16.mxu0 0
  %379 = vmatpush1.bf16.msra.mxu0 0
  %380 = vmatprep.subr.bf16.mxu0 0
  %381 = vmatpush1.bf16.msra.mxu0 0
  %382 = vmatprep.subr.bf16.mxu0 0
  %383 = vmatpush1.bf16.msra.mxu0 0
  %384 = vmatprep.subr.bf16.mxu0 0
  %385 = vmatpush1.bf16.msra.mxu0 0
  %386 = vmatprep.mubr.bf16.mxu0 0
  %387 = vmatmul.mubr.bf16.gmra.mrb[0].mxu0 %v298
  %v388 = vpop.f32.mrb[0].mxu0
  %v389 = vadd.f32 0.0, %v388
  %v390 = vpop.f32.mrb[0].mxu0
  %v391 = vpop.f32.mrb[0].mxu0
  %v392 = vadd.f32 0.0, %v391
  %v393 = vpop.f32.mrb[0].mxu0
  %394 = vmatprep.mubr.bf16.mxu0 0
  %395 = vmatmul.mubr.bf16.gmra.mrb[0].mxu0 %v299
  %v396 = vpop.f32.mrb[0].mxu0
  %v397 = vadd.f32 0.0, %v396
  %v398 = vpop.f32.mrb[0].mxu0
  %v399 = vpop.f32.mrb[0].mxu0
  %v400 = vadd.f32 0.0, %v399
  %v401 = vpop.f32.mrb[0].mxu0
  %402 = vmatprep.mubr.bf16.mxu0 0
  %403 = vmatmul.mubr.bf16.gmra.mrb[0].mxu0 %v300
  %v404 = vpop.f32.mrb[0].mxu0
  %v405 = vadd.f32 0.0, %v404
  %v406 = vpop.f32.mrb[0].mxu0
  %v407 = vpop.f32.mrb[0].mxu0
  %v408 = vadd.f32 0.0, %v407
  %v409 = vpop.f32.mrb[0].mxu0
  %410 = vmatprep.mubr.bf16.mxu0 0
  %411 = vmatmul.mubr.bf16.gmra.mrb[0].mxu0 %v301
  %v412 = vpop.f32.mrb[0].mxu0
  %v413 = vadd.f32 0.0, %v412
  %v414 = vpop.f32.mrb[0].mxu0
  %v415 = vpop.f32.mrb[0].mxu0
  %v416 = vadd.f32 0.0, %v415
  %v417 = vpop.f32.mrb[0].mxu0
  %418 = vmatprep.mubr.bf16.mxu0 0
  %419 = vmatmul.mubr.bf16.gmra.mrb[0].mxu0 %v302
  %v420 = vpop.f32.mrb[0].mxu0
  %v421 = vadd.f32 0.0, %v420
  %v422 = vpop.f32.mrb[0].mxu0
  %v423 = vpop.f32.mrb[0].mxu0
  %v424 = vadd.f32 0.0, %v423
  %v425 = vpop.f32.mrb[0].mxu0
  %426 = vmatprep.mubr.bf16.mxu0 0
  %427 = vmatmul.mubr.bf16.gmra.mrb[0].mxu0 %v303
  %v428 = vpop.f32.mrb[0].mxu0
  %v429 = vadd.f32 0.0, %v428
  %v430 = vpop.f32.mrb[0].mxu0
  %v431 = vpop.f32.mrb[0].mxu0
  %v432 = vadd.f32 0.0, %v431
  %v433 = vpop.f32.mrb[0].mxu0
  %434 = vmatprep.mubr.bf16.mxu0 0
  %435 = vmatmul.mubr.bf16.gmra.mrb[0].mxu0 %v304
  %v436 = vpop.f32.mrb[0].mxu0
  %v437 = vadd.f32 0.0, %v436
  %v438 = vpop.f32.mrb[0].mxu0
  %v439 = vpop.f32.mrb[0].mxu0
  %v440 = vadd.f32 0.0, %v439
  %v441 = vpop.f32.mrb[0].mxu0
  %442 = vmatprep.mubr.bf16.mxu0 0
  %443 = vmatmul.mubr.bf16.gmra.mrb[0].mxu0 %v305
  %v444 = vpop.f32.mrb[0].mxu0
  %v445 = vadd.f32 0.0, %v444
  %v446 = vpop.f32.mrb[0].mxu0
  %v447 = vpop.f32.mrb[0].mxu0
  %v448 = vadd.f32 0.0, %v447
  %v449 = vpop.f32.mrb[0].mxu0
  %450 = vdwg.mxu0
  %v451 = vpack.c.bf16 %v392, %v389
  %v452 = vpack.c.bf16 %v400, %v397
  %v453 = vpack.c.bf16 %v408, %v405
  %v454 = vpack.c.bf16 %v416, %v413
  %v455 = vpack.c.bf16 %v424, %v421
  %v456 = vpack.c.bf16 %v432, %v429
  %v457 = vpack.c.bf16 %v440, %v437
  %v458 = vpack.c.bf16 %v448, %v445
  %v460 = vlaneseq
  %v461 = vshrl.u32 %v460, 7
  %v462 = vsub.s32 0, %v461
  %v463 = vrot.slane %v297, %v462
  %v481 = vunpack.c.l.b16 %v265
  %v482 = vunpack.c.l.b16 %v266
  %v483 = vunpack.c.l.b16 %v267
  %v484 = vunpack.c.l.b16 %v268
  %v485 = vunpack.c.l.b16 %v269
  %v486 = vunpack.c.l.b16 %v270
  %v487 = vunpack.c.l.b16 %v271
  %v488 = vunpack.c.l.b16 %v272
  %v489 = vunpack.c.l.b16 %v273
  %v490 = vunpack.c.l.b16 %v274
  %v491 = vunpack.c.l.b16 %v275
  %v492 = vunpack.c.l.b16 %v276
  %v493 = vunpack.c.l.b16 %v277
  %v494 = vunpack.c.l.b16 %v278
  %v495 = vunpack.c.l.b16 %v279
  %v496 = vunpack.c.l.b16 %v280
  %v497 = vpack.c.b16 %v482, %v481
  %v498 = vpack.c.b16 %v484, %v483
  %v499 = vpack.c.b16 %v486, %v485
  %v500 = vpack.c.b16 %v488, %v487
  %v501 = vpack.c.b16 %v490, %v489
  %v502 = vpack.c.b16 %v492, %v491
  %v503 = vpack.c.b16 %v494, %v493
  %v504 = vpack.c.b16 %v496, %v495
  %513 = vmatprep.subr.bf16.mxu0 0
  %514 = vmatpush1.bf16.msra.mxu0 %v451
  %515 = vmatprep.subr.bf16.mxu0 0
  %516 = vmatpush1.bf16.msra.mxu0 %v452
  %517 = vmatprep.subr.bf16.mxu0 0
  %518 = vmatpush1.bf16.msra.mxu0 %v453
  %519 = vmatprep.subr.bf16.mxu0 0
  %520 = vmatpush1.bf16.msra.mxu0 %v454
  %521 = vmatprep.subr.bf16.mxu0 0
  %522 = vmatpush1.bf16.msra.mxu0 %v455
  %523 = vmatprep.subr.bf16.mxu0 0
  %524 = vmatpush1.bf16.msra.mxu0 %v456
  %525 = vmatprep.subr.bf16.mxu0 0
  %526 = vmatpush1.bf16.msra.mxu0 %v457
  %527 = vmatprep.subr.bf16.mxu0 0
  %528 = vmatpush1.bf16.msra.mxu0 %v458
  %529 = vmatprep.subr.bf16.mxu0 0
  %530 = vmatpush1.bf16.msra.mxu0 0
  %531 = vmatprep.subr.bf16.mxu0 0
  %532 = vmatpush1.bf16.msra.mxu0 0
  %533 = vmatprep.subr.bf16.mxu0 0
  %534 = vmatpush1.bf16.msra.mxu0 0
  %535 = vmatprep.subr.bf16.mxu0 0
  %536 = vmatpush1.bf16.msra.mxu0 0
  %537 = vmatprep.subr.bf16.mxu0 0
  %538 = vmatpush1.bf16.msra.mxu0 0
  %539 = vmatprep.subr.bf16.mxu0 0
  %540 = vmatpush1.bf16.msra.mxu0 0
  %541 = vmatprep.subr.bf16.mxu0 0
  %542 = vmatpush1.bf16.msra.mxu0 0
  %543 = vmatprep.subr.bf16.mxu0 0
  %544 = vmatpush1.bf16.msra.mxu0 0
  %545 = vmatprep.mubr.bf16.mxu0 0
  %546 = vmatmul.mubr.bf16.gmra.mrb[0].mxu0 %v497
  %v547 = vpop.f32.mrb[0].mxu0
  %v548 = vadd.f32 %v463, %v547
  %v549 = vpop.f32.mrb[0].mxu0
  %v550 = vpop.f32.mrb[0].mxu0
  %v551 = vadd.f32 %v463, %v550
  %v552 = vpop.f32.mrb[0].mxu0
  %553 = vmatprep.mubr.bf16.mxu0 0
  %554 = vmatmul.mubr.bf16.gmra.mrb[0].mxu0 %v498
  %v555 = vpop.f32.mrb[0].mxu0
  %v556 = vadd.f32 %v463, %v555
  %v557 = vpop.f32.mrb[0].mxu0
  %v558 = vpop.f32.mrb[0].mxu0
  %v559 = vadd.f32 %v463, %v558
  %v560 = vpop.f32.mrb[0].mxu0
  %561 = vmatprep.mubr.bf16.mxu0 0
  %562 = vmatmul.mubr.bf16.gmra.mrb[0].mxu0 %v499
  %v563 = vpop.f32.mrb[0].mxu0
  %v564 = vadd.f32 %v463, %v563
  %v565 = vpop.f32.mrb[0].mxu0
  %v566 = vpop.f32.mrb[0].mxu0
  %v567 = vadd.f32 %v463, %v566
  %v568 = vpop.f32.mrb[0].mxu0
  %569 = vmatprep.mubr.bf16.mxu0 0
  %570 = vmatmul.mubr.bf16.gmra.mrb[0].mxu0 %v500
  %v571 = vpop.f32.mrb[0].mxu0
  %v572 = vadd.f32 %v463, %v571
  %v573 = vpop.f32.mrb[0].mxu0
  %v574 = vpop.f32.mrb[0].mxu0
  %v575 = vadd.f32 %v463, %v574
  %v576 = vpop.f32.mrb[0].mxu0
  %577 = vmatprep.mubr.bf16.mxu0 0
  %578 = vmatmul.mubr.bf16.gmra.mrb[0].mxu0 %v501
  %v579 = vpop.f32.mrb[0].mxu0
  %v580 = vadd.f32 %v463, %v579
  %v581 = vpop.f32.mrb[0].mxu0
  %v582 = vpop.f32.mrb[0].mxu0
  %v583 = vadd.f32 %v463, %v582
  %v584 = vpop.f32.mrb[0].mxu0
  %585 = vmatprep.mubr.bf16.mxu0 0
  %586 = vmatmul.mubr.bf16.gmra.mrb[0].mxu0 %v502
  %v587 = vpop.f32.mrb[0].mxu0
  %v588 = vadd.f32 %v463, %v587
  %v589 = vpop.f32.mrb[0].mxu0
  %v590 = vpop.f32.mrb[0].mxu0
  %v591 = vadd.f32 %v463, %v590
  %v592 = vpop.f32.mrb[0].mxu0
  %593 = vmatprep.mubr.bf16.mxu0 0
  %594 = vmatmul.mubr.bf16.gmra.mrb[0].mxu0 %v503
  %v595 = vpop.f32.mrb[0].mxu0
  %v596 = vadd.f32 %v463, %v595
  %v597 = vpop.f32.mrb[0].mxu0
  %v598 = vpop.f32.mrb[0].mxu0
  %v599 = vadd.f32 %v463, %v598
  %v600 = vpop.f32.mrb[0].mxu0
  %601 = vmatprep.mubr.bf16.mxu0 0
  %602 = vmatmul.mubr.bf16.gmra.mrb[0].mxu0 %v504
  %v603 = vpop.f32.mrb[0].mxu0
  %v604 = vadd.f32 %v463, %v603
  %v605 = vpop.f32.mrb[0].mxu0
  %v606 = vpop.f32.mrb[0].mxu0
  %v607 = vadd.f32 %v463, %v606
  %v608 = vpop.f32.mrb[0].mxu0
  %609 = vdwg.mxu0
  %v610 = vmax.f32 %v548, 0.0
  %v611 = vmax.f32 %v551, 0.0
  %v612 = vmax.f32 %v556, 0.0
  %v613 = vmax.f32 %v559, 0.0
  %v614 = vmax.f32 %v564, 0.0
  %v615 = vmax.f32 %v567, 0.0
  %v616 = vmax.f32 %v572, 0.0
  %v617 = vmax.f32 %v575, 0.0
  %v618 = vmax.f32 %v580, 0.0
  %v619 = vmax.f32 %v583, 0.0
  %v620 = vmax.f32 %v588, 0.0
  %v621 = vmax.f32 %v591, 0.0
  %v622 = vmax.f32 %v596, 0.0
  %v623 = vmax.f32 %v599, 0.0
  %v624 = vmax.f32 %v604, 0.0
  %v625 = vmax.f32 %v607, 0.0
  %s626 = scalar_lea.vmem %s5, 64
  %v627 = vld [vmem:[%s626] sm:$0xf]
  %v628 = vld [vmem:[%s626 + $0x4] sm:$0xf]
  %v629 = vld [vmem:[%s626 + $0x8] sm:$0xf]
  %v630 = vld [vmem:[%s626 + $0xc] sm:$0xf]
  %v631 = vld [vmem:[%s626 + $0x10] sm:$0xf]
  %v632 = vld [vmem:[%s626 + $0x14] sm:$0xf]
  %v633 = vld [vmem:[%s626 + $0x18] sm:$0xf]
  %v634 = vld [vmem:[%s626 + $0x1c] sm:$0xf]
  %v635 = vld [vmem:[%s626 + $0x20] sm:$0xf]
  %v636 = vld [vmem:[%s626 + $0x24] sm:$0xf]
  %v637 = vld [vmem:[%s626 + $0x28] sm:$0xf]
  %v638 = vld [vmem:[%s626 + $0x2c] sm:$0xf]
  %v639 = vld [vmem:[%s626 + $0x30] sm:$0xf]
  %v640 = vld [vmem:[%s626 + $0x34] sm:$0xf]
  %v641 = vld [vmem:[%s626 + $0x38] sm:$0xf]
  %v642 = vld [vmem:[%s626 + $0x3c] sm:$0xf]
  %s643 = scalar_lea.vmem %s6, 1
  %v644 = vld [vmem:[%s643] sm:$0x1]
  %v645 = vpack.c.bf16 %v611, %v610
  %v646 = vpack.c.bf16 %v613, %v612
  %v647 = vpack.c.bf16 %v615, %v614
  %v648 = vpack.c.bf16 %v617, %v616
  %v649 = vpack.c.bf16 %v619, %v618
  %v650 = vpack.c.bf16 %v621, %v620
  %v651 = vpack.c.bf16 %v623, %v622
  %v652 = vpack.c.bf16 %v625, %v624
  %v669 = vunpack.c.l.b16 %v627
  %v670 = vunpack.c.l.b16 %v628
  %v671 = vunpack.c.l.b16 %v629
  %v672 = vunpack.c.l.b16 %v630
  %v673 = vunpack.c.l.b16 %v631
  %v674 = vunpack.c.l.b16 %v632
  %v675 = vunpack.c.l.b16 %v633
  %v676 = vunpack.c.l.b16 %v634
  %v677 = vunpack.c.l.b16 %v635
  %v678 = vunpack.c.l.b16 %v636
  %v679 = vunpack.c.l.b16 %v637
  %v680 = vunpack.c.l.b16 %v638
  %v681 = vunpack.c.l.b16 %v639
  %v682 = vunpack.c.l.b16 %v640
  %v683 = vunpack.c.l.b16 %v641
  %v684 = vunpack.c.l.b16 %v642
  %v685 = vpack.c.b16 %v670, %v669
  %v686 = vpack.c.b16 %v672, %v671
  %v687 = vpack.c.b16 %v674, %v673
  %v688 = vpack.c.b16 %v676, %v675
  %v689 = vpack.c.b16 %v678, %v677
  %v690 = vpack.c.b16 %v680, %v679
  %v691 = vpack.c.b16 %v682, %v681
  %v692 = vpack.c.b16 %v684, %v683
  %701 = vmatprep.subr.bf16.mxu0 0
  %702 = vmatpush1.bf16.msra.mxu0 %v685
  %703 = vmatprep.subr.bf16.mxu0 0
  %704 = vmatpush1.bf16.msra.mxu0 %v686
  %705 = vmatprep.subr.bf16.mxu0 0
  %706 = vmatpush1.bf16.msra.mxu0 %v687
  %707 = vmatprep.subr.bf16.mxu0 0
  %708 = vmatpush1.bf16.msra.mxu0 %v688
  %709 = vmatprep.subr.bf16.mxu0 0
  %710 = vmatpush1.bf16.msra.mxu0 %v689
  %711 = vmatprep.subr.bf16.mxu0 0
  %712 = vmatpush1.bf16.msra.mxu0 %v690
  %713 = vmatprep.subr.bf16.mxu0 0
  %714 = vmatpush1.bf16.msra.mxu0 %v691
  %715 = vmatprep.subr.bf16.mxu0 0
  %716 = vmatpush1.bf16.msra.mxu0 %v692
  %717 = vmatprep.subr.bf16.mxu0 0
  %718 = vmatpush1.bf16.msra.mxu0 0
  %719 = vmatprep.subr.bf16.mxu0 0
  %720 = vmatpush1.bf16.msra.mxu0 0
  %721 = vmatprep.subr.bf16.mxu0 0
  %722 = vmatpush1.bf16.msra.mxu0 0
  %723 = vmatprep.subr.bf16.mxu0 0
  %724 = vmatpush1.bf16.msra.mxu0 0
  %725 = vmatprep.subr.bf16.mxu0 0
  %726 = vmatpush1.bf16.msra.mxu0 0
  %727 = vmatprep.subr.bf16.mxu0 0
  %728 = vmatpush1.bf16.msra.mxu0 0
  %729 = vmatprep.subr.bf16.mxu0 0
  %730 = vmatpush1.bf16.msra.mxu0 0
  %731 = vmatprep.subr.bf16.mxu0 0
  %732 = vmatpush1.bf16.msra.mxu0 0
  %733 = vmatprep.mubr.bf16.mxu0 0
  %734 = vmatmul.mubr.bf16.gmra.mrb[0].mxu0 %v645
  %v735 = vpop.f32.mrb[0].mxu0
  %v736 = vadd.f32 0.0, %v735
  %v737 = vpop.f32.mrb[0].mxu0
  %v738 = vpop.f32.mrb[0].mxu0
  %v739 = vadd.f32 0.0, %v738
  %v740 = vpop.f32.mrb[0].mxu0
  %741 = vmatprep.mubr.bf16.mxu0 0
  %742 = vmatmul.mubr.bf16.gmra.mrb[0].mxu0 %v646
  %v743 = vpop.f32.mrb[0].mxu0
  %v744 = vadd.f32 0.0, %v743
  %v745 = vpop.f32.mrb[0].mxu0
  %v746 = vpop.f32.mrb[0].mxu0
  %v747 = vadd.f32 0.0, %v746
  %v748 = vpop.f32.mrb[0].mxu0
  %749 = vmatprep.mubr.bf16.mxu0 0
  %750 = vmatmul.mubr.bf16.gmra.mrb[0].mxu0 %v647
  %v751 = vpop.f32.mrb[0].mxu0
  %v752 = vadd.f32 0.0, %v751
  %v753 = vpop.f32.mrb[0].mxu0
  %v754 = vpop.f32.mrb[0].mxu0
  %v755 = vadd.f32 0.0, %v754
  %v756 = vpop.f32.mrb[0].mxu0
  %757 = vmatprep.mubr.bf16.mxu0 0
  %758 = vmatmul.mubr.bf16.gmra.mrb[0].mxu0 %v648
  %v759 = vpop.f32.mrb[0].mxu0
  %v760 = vadd.f32 0.0, %v759
  %v761 = vpop.f32.mrb[0].mxu0
  %v762 = vpop.f32.mrb[0].mxu0
  %v763 = vadd.f32 0.0, %v762
  %v764 = vpop.f32.mrb[0].mxu0
  %765 = vmatprep.mubr.bf16.mxu0 0
  %766 = vmatmul.mubr.bf16.gmra.mrb[0].mxu0 %v649
  %v767 = vpop.f32.mrb[0].mxu0
  %v768 = vadd.f32 0.0, %v767
  %v769 = vpop.f32.mrb[0].mxu0
  %v770 = vpop.f32.mrb[0].mxu0
  %v771 = vadd.f32 0.0, %v770
  %v772 = vpop.f32.mrb[0].mxu0
  %773 = vmatprep.mubr.bf16.mxu0 0
  %774 = vmatmul.mubr.bf16.gmra.mrb[0].mxu0 %v650
  %v775 = vpop.f32.mrb[0].mxu0
  %v776 = vadd.f32 0.0, %v775
  %v777 = vpop.f32.mrb[0].mxu0
  %v778 = vpop.f32.mrb[0].mxu0
  %v779 = vadd.f32 0.0, %v778
  %v780 = vpop.f32.mrb[0].mxu0
  %781 = vmatprep.mubr.bf16.mxu0 0
  %782 = vmatmul.mubr.bf16.gmra.mrb[0].mxu0 %v651
  %v783 = vpop.f32.mrb[0].mxu0
  %v784 = vadd.f32 0.0, %v783
  %v785 = vpop.f32.mrb[0].mxu0
  %v786 = vpop.f32.mrb[0].mxu0
  %v787 = vadd.f32 0.0, %v786
  %v788 = vpop.f32.mrb[0].mxu0
  %789 = vmatprep.mubr.bf16.mxu0 0
  %790 = vmatmul.mubr.bf16.gmra.mrb[0].mxu0 %v652
  %v791 = vpop.f32.mrb[0].mxu0
  %v792 = vadd.f32 0.0, %v791
  %v793 = vpop.f32.mrb[0].mxu0
  %v794 = vpop.f32.mrb[0].mxu0
  %v795 = vadd.f32 0.0, %v794
  %v796 = vpop.f32.mrb[0].mxu0
  %797 = vdwg.mxu0
  %v798 = vpack.c.bf16 %v739, %v736
  %v799 = vpack.c.bf16 %v747, %v744
  %v800 = vpack.c.bf16 %v755, %v752
  %v801 = vpack.c.bf16 %v763, %v760
  %v802 = vpack.c.bf16 %v771, %v768
  %v803 = vpack.c.bf16 %v779, %v776
  %v804 = vpack.c.bf16 %v787, %v784
  %v805 = vpack.c.bf16 %v795, %v792
  %v807 = vlaneseq
  %v808 = vshrl.u32 %v807, 7
  %v809 = vsub.s32 0, %v808
  %v810 = vrot.slane %v644, %v809
  %812 = vmatprep.subr.bf16.mxu0 0
  %813 = vmatpush1.bf16.msra.mxu0 %v798
  %814 = vmatprep.subr.bf16.mxu0 0
  %815 = vmatpush1.bf16.msra.mxu0 %v799
  %816 = vmatprep.subr.bf16.mxu0 0
  %817 = vmatpush1.bf16.msra.mxu0 %v800
  %818 = vmatprep.subr.bf16.mxu0 0
  %819 = vmatpush1.bf16.msra.mxu0 %v801
  %820 = vmatprep.subr.bf16.mxu0 0
  %821 = vmatpush1.bf16.msra.mxu0 %v802
  %822 = vmatprep.subr.bf16.mxu0 0
  %823 = vmatpush1.bf16.msra.mxu0 %v803
  %824 = vmatprep.subr.bf16.mxu0 0
  %825 = vmatpush1.bf16.msra.mxu0 %v804
  %826 = vmatprep.subr.bf16.mxu0 0
  %827 = vmatpush1.bf16.msra.mxu0 %v805
  %828 = vmatprep.subr.bf16.mxu0 0
  %829 = vmatpush1.bf16.msra.mxu0 0
  %830 = vmatprep.subr.bf16.mxu0 0
  %831 = vmatpush1.bf16.msra.mxu0 0
  %832 = vmatprep.subr.bf16.mxu0 0
  %833 = vmatpush1.bf16.msra.mxu0 0
  %834 = vmatprep.subr.bf16.mxu0 0
  %835 = vmatpush1.bf16.msra.mxu0 0
  %836 = vmatprep.subr.bf16.mxu0 0
  %837 = vmatpush1.bf16.msra.mxu0 0
  %838 = vmatprep.subr.bf16.mxu0 0
  %839 = vmatpush1.bf16.msra.mxu0 0
  %840 = vmatprep.subr.bf16.mxu0 0
  %841 = vmatpush1.bf16.msra.mxu0 0
  %842 = vmatprep.subr.bf16.mxu0 0
  %843 = vmatpush1.bf16.msra.mxu0 0
  %844 = vmatprep.mubr.bf16.mxu0 0
  %845 = vmatmul.mubr.bf16.gmra.mrb[0].mxu0 %v497
  %v846 = vpop.f32.mrb[0].mxu0
  %v847 = vadd.f32 %v810, %v846
  %v848 = vpop.f32.mrb[0].mxu0
  %v849 = vpop.f32.mrb[0].mxu0
  %v850 = vadd.f32 %v810, %v849
  %v851 = vpop.f32.mrb[0].mxu0
  %852 = vmatprep.mubr.bf16.mxu0 0
  %853 = vmatmul.mubr.bf16.gmra.mrb[0].mxu0 %v498
  %v854 = vpop.f32.mrb[0].mxu0
  %v855 = vadd.f32 %v810, %v854
  %v856 = vpop.f32.mrb[0].mxu0
  %v857 = vpop.f32.mrb[0].mxu0
  %v858 = vadd.f32 %v810, %v857
  %v859 = vpop.f32.mrb[0].mxu0
  %860 = vmatprep.mubr.bf16.mxu0 0
  %861 = vmatmul.mubr.bf16.gmra.mrb[0].mxu0 %v499
  %v862 = vpop.f32.mrb[0].mxu0
  %v863 = vadd.f32 %v810, %v862
  %v864 = vpop.f32.mrb[0].mxu0
  %v865 = vpop.f32.mrb[0].mxu0
  %v866 = vadd.f32 %v810, %v865
  %v867 = vpop.f32.mrb[0].mxu0
  %868 = vmatprep.mubr.bf16.mxu0 0
  %869 = vmatmul.mubr.bf16.gmra.mrb[0].mxu0 %v500
  %v870 = vpop.f32.mrb[0].mxu0
  %v871 = vadd.f32 %v810, %v870
  %v872 = vpop.f32.mrb[0].mxu0
  %v873 = vpop.f32.mrb[0].mxu0
  %v874 = vadd.f32 %v810, %v873
  %v875 = vpop.f32.mrb[0].mxu0
  %876 = vmatprep.mubr.bf16.mxu0 0
  %877 = vmatmul.mubr.bf16.gmra.mrb[0].mxu0 %v501
  %v878 = vpop.f32.mrb[0].mxu0
  %v879 = vadd.f32 %v810, %v878
  %v880 = vpop.f32.mrb[0].mxu0
  %v881 = vpop.f32.mrb[0].mxu0
  %v882 = vadd.f32 %v810, %v881
  %v883 = vpop.f32.mrb[0].mxu0
  %884 = vmatprep.mubr.bf16.mxu0 0
  %885 = vmatmul.mubr.bf16.gmra.mrb[0].mxu0 %v502
  %v886 = vpop.f32.mrb[0].mxu0
  %v887 = vadd.f32 %v810, %v886
  %v888 = vpop.f32.mrb[0].mxu0
  %v889 = vpop.f32.mrb[0].mxu0
  %v890 = vadd.f32 %v810, %v889
  %v891 = vpop.f32.mrb[0].mxu0
  %892 = vmatprep.mubr.bf16.mxu0 0
  %893 = vmatmul.mubr.bf16.gmra.mrb[0].mxu0 %v503
  %v894 = vpop.f32.mrb[0].mxu0
  %v895 = vadd.f32 %v810, %v894
  %v896 = vpop.f32.mrb[0].mxu0
  %v897 = vpop.f32.mrb[0].mxu0
  %v898 = vadd.f32 %v810, %v897
  %v899 = vpop.f32.mrb[0].mxu0
  %900 = vmatprep.mubr.bf16.mxu0 0
  %901 = vmatmul.mubr.bf16.gmra.mrb[0].mxu0 %v504
  %v902 = vpop.f32.mrb[0].mxu0
  %v903 = vadd.f32 %v810, %v902
  %v904 = vpop.f32.mrb[0].mxu0
  %v905 = vpop.f32.mrb[0].mxu0
  %v906 = vadd.f32 %v810, %v905
  %v907 = vpop.f32.mrb[0].mxu0
  %908 = vdwg.mxu0
  %v909 = vmax.f32 %v847, 0.0
  %v910 = vmax.f32 %v850, 0.0
  %v911 = vmax.f32 %v855, 0.0
  %v912 = vmax.f32 %v858, 0.0
  %v913 = vmax.f32 %v863, 0.0
  %v914 = vmax.f32 %v866, 0.0
  %v915 = vmax.f32 %v871, 0.0
  %v916 = vmax.f32 %v874, 0.0
  %v917 = vmax.f32 %v879, 0.0
  %v918 = vmax.f32 %v882, 0.0
  %v919 = vmax.f32 %v887, 0.0
  %v920 = vmax.f32 %v890, 0.0
  %v921 = vmax.f32 %v895, 0.0
  %v922 = vmax.f32 %v898, 0.0
  %v923 = vmax.f32 %v903, 0.0
  %v924 = vmax.f32 %v906, 0.0
  %v925 = vld [vmem:[%s2] sm:$0xf]
  %v926 = vld [vmem:[%s2 + $0x4] sm:$0xf]
  %v927 = vpack.c.bf16 %v910, %v909
  %v928 = vpack.c.bf16 %v912, %v911
  %v929 = vpack.c.bf16 %v914, %v913
  %v930 = vpack.c.bf16 %v916, %v915
  %v931 = vpack.c.bf16 %v918, %v917
  %v932 = vpack.c.bf16 %v920, %v919
  %v933 = vpack.c.bf16 %v922, %v921
  %v934 = vpack.c.bf16 %v924, %v923
  %v937 = vunpack.c.l.b16 %v925
  %v938 = vunpack.c.l.b16 %v926
  %v939 = vpack.c.b16 %v938, %v937
  %941 = vmatprep.subr.bf16.mxu0 0
  %942 = vmatpush1.bf16.msra.mxu0 %v927
  %943 = vmatprep.subr.bf16.mxu0 0
  %944 = vmatpush1.bf16.msra.mxu0 %v928
  %945 = vmatprep.subr.bf16.mxu0 0
  %946 = vmatpush1.bf16.msra.mxu0 %v929
  %947 = vmatprep.subr.bf16.mxu0 0
  %948 = vmatpush1.bf16.msra.mxu0 %v930
  %949 = vmatprep.subr.bf16.mxu0 0
  %950 = vmatpush1.bf16.msra.mxu0 %v931
  %951 = vmatprep.subr.bf16.mxu0 0
  %952 = vmatpush1.bf16.msra.mxu0 %v932
  %953 = vmatprep.subr.bf16.mxu0 0
  %954 = vmatpush1.bf16.msra.mxu0 %v933
  %955 = vmatprep.subr.bf16.mxu0 0
  %956 = vmatpush1.bf16.msra.mxu0 %v934
  %957 = vmatprep.subr.bf16.mxu0 0
  %958 = vmatpush1.bf16.msra.mxu0 0
  %959 = vmatprep.subr.bf16.mxu0 0
  %960 = vmatpush1.bf16.msra.mxu0 0
  %961 = vmatprep.subr.bf16.mxu0 0
  %962 = vmatpush1.bf16.msra.mxu0 0
  %963 = vmatprep.subr.bf16.mxu0 0
  %964 = vmatpush1.bf16.msra.mxu0 0
  %965 = vmatprep.subr.bf16.mxu0 0
  %966 = vmatpush1.bf16.msra.mxu0 0
  %967 = vmatprep.subr.bf16.mxu0 0
  %968 = vmatpush1.bf16.msra.mxu0 0
  %969 = vmatprep.subr.bf16.mxu0 0
  %970 = vmatpush1.bf16.msra.mxu0 0
  %971 = vmatprep.subr.bf16.mxu0 0
  %972 = vmatpush1.bf16.msra.mxu0 0
  %973 = vmatprep.mubr.bf16.mxu0 0
  %974 = vmatmul.mubr.bf16.gmra.mrb[0].mxu0 %v939
  %v975 = vpop.f32.mrb[0].mxu0
  %v976 = vadd.f32 0.0, %v975
  %v977 = vpop.f32.mrb[0].mxu0
  %v978 = vpop.f32.mrb[0].mxu0
  %v979 = vadd.f32 0.0, %v978
  %v980 = vpop.f32.mrb[0].mxu0
  %981 = vdwg.mxu0
  %v982 = vpack.c.bf16 %v979, %v976
  %v983 = vld [vmem:[%s7] sm:$0xf]
  %v984 = vld [vmem:[%s7 + $0x4] sm:$0xf]
  %v985 = vld [vmem:[%s7 + $0x8] sm:$0xf]
  %v986 = vld [vmem:[%s7 + $0xc] sm:$0xf]
  %v987 = vld [vmem:[%s7 + $0x10] sm:$0xf]
  %v988 = vld [vmem:[%s7 + $0x14] sm:$0xf]
  %v989 = vld [vmem:[%s7 + $0x18] sm:$0xf]
  %v990 = vld [vmem:[%s7 + $0x1c] sm:$0xf]
  %v991 = vld [vmem:[%s7 + $0x20] sm:$0xf]
  %v992 = vld [vmem:[%s7 + $0x24] sm:$0xf]
  %v993 = vld [vmem:[%s7 + $0x28] sm:$0xf]
  %v994 = vld [vmem:[%s7 + $0x2c] sm:$0xf]
  %v995 = vld [vmem:[%s7 + $0x30] sm:$0xf]
  %v996 = vld [vmem:[%s7 + $0x34] sm:$0xf]
  %v997 = vld [vmem:[%s7 + $0x38] sm:$0xf]
  %v998 = vld [vmem:[%s7 + $0x3c] sm:$0xf]
  %v999 = vld [vmem:[%s8] sm:$0x1]
  %v1001 = vlaneseq
  %v1002 = vshrl.u32 %v1001, 7
  %v1003 = vsub.s32 0, %v1002
  %v1004 = vrot.slane %v999, %v1003
  %v1022 = vunpack.c.l.b16 %v983
  %v1023 = vunpack.c.l.b16 %v984
  %v1024 = vunpack.c.l.b16 %v985
  %v1025 = vunpack.c.l.b16 %v986
  %v1026 = vunpack.c.l.b16 %v987
  %v1027 = vunpack.c.l.b16 %v988
  %v1028 = vunpack.c.l.b16 %v989
  %v1029 = vunpack.c.l.b16 %v990
  %v1030 = vunpack.c.l.b16 %v991
  %v1031 = vunpack.c.l.b16 %v992
  %v1032 = vunpack.c.l.b16 %v993
  %v1033 = vunpack.c.l.b16 %v994
  %v1034 = vunpack.c.l.b16 %v995
  %v1035 = vunpack.c.l.b16 %v996
  %v1036 = vunpack.c.l.b16 %v997
  %v1037 = vunpack.c.l.b16 %v998
  %v1038 = vpack.c.b16 %v1023, %v1022
  %v1039 = vpack.c.b16 %v1025, %v1024
  %v1040 = vpack.c.b16 %v1027, %v1026
  %v1041 = vpack.c.b16 %v1029, %v1028
  %v1042 = vpack.c.b16 %v1031, %v1030
  %v1043 = vpack.c.b16 %v1033, %v1032
  %v1044 = vpack.c.b16 %v1035, %v1034
  %v1045 = vpack.c.b16 %v1037, %v1036
  %1054 = vmatprep.subr.bf16.mxu0 0
  %1055 = vmatpush1.bf16.msra.mxu0 %v1038
  %1056 = vmatprep.subr.bf16.mxu0 0
  %1057 = vmatpush1.bf16.msra.mxu0 %v1039
  %1058 = vmatprep.subr.bf16.mxu0 0
  %1059 = vmatpush1.bf16.msra.mxu0 %v1040
  %1060 = vmatprep.subr.bf16.mxu0 0
  %1061 = vmatpush1.bf16.msra.mxu0 %v1041
  %1062 = vmatprep.subr.bf16.mxu0 0
  %1063 = vmatpush1.bf16.msra.mxu0 %v1042
  %1064 = vmatprep.subr.bf16.mxu0 0
  %1065 = vmatpush1.bf16.msra.mxu0 %v1043
  %1066 = vmatprep.subr.bf16.mxu0 0
  %1067 = vmatpush1.bf16.msra.mxu0 %v1044
  %1068 = vmatprep.subr.bf16.mxu0 0
  %1069 = vmatpush1.bf16.msra.mxu0 %v1045
  %1070 = vmatprep.subr.bf16.mxu0 0
  %1071 = vmatpush1.bf16.msra.mxu0 0
  %1072 = vmatprep.subr.bf16.mxu0 0
  %1073 = vmatpush1.bf16.msra.mxu0 0
  %1074 = vmatprep.subr.bf16.mxu0 0
  %1075 = vmatpush1.bf16.msra.mxu0 0
  %1076 = vmatprep.subr.bf16.mxu0 0
  %1077 = vmatpush1.bf16.msra.mxu0 0
  %1078 = vmatprep.subr.bf16.mxu0 0
  %1079 = vmatpush1.bf16.msra.mxu0 0
  %1080 = vmatprep.subr.bf16.mxu0 0
  %1081 = vmatpush1.bf16.msra.mxu0 0
  %1082 = vmatprep.subr.bf16.mxu0 0
  %1083 = vmatpush1.bf16.msra.mxu0 0
  %1084 = vmatprep.subr.bf16.mxu0 0
  %1085 = vmatpush1.bf16.msra.mxu0 0
  %1086 = vmatprep.mubr.bf16.mxu0 0
  %1087 = vmatmul.mubr.bf16.gmra.mrb[0].mxu0 %v982
  %v1088 = vpop.f32.mrb[0].mxu0
  %v1089 = vadd.f32 %v1004, %v1088
  %v1090 = vpop.f32.mrb[0].mxu0
  %v1091 = vpop.f32.mrb[0].mxu0
  %v1092 = vadd.f32 %v1004, %v1091
  %v1093 = vpop.f32.mrb[0].mxu0
  %1094 = vdwg.mxu0
  %1095 = vst [vmem:[%s9] sm:$0xff] %v1089
  %1096 = vst [vmem:[%s9 + $0x8] sm:$0xff] %v1092
  // Predicated region
  $region38: #{linear_graph_forward.1} parent=0 // pred_check
    _
  $region39: #{linear_graph_forward.1} parent=0 // pred_check_branch
    %1098 = sbr.rel (0) target = $region41
  $region40: #{linear_graph_forward.1} parent=0 // pred_region
    _
  $region41: #{linear_graph_forward.1} parent=0 // pred_fallthru
    _
  // Predicated region
  $region42: #{linear_graph_forward.1} parent=0 // pred_check
    _
  $region43: #{linear_graph_forward.1} parent=0 // pred_check_branch
    %1100 = sbr.rel (0) target = $region45
  $region44: #{linear_graph_forward.1} parent=0 // pred_region
    _
  $region45: #{linear_graph_forward.1} parent=0 // pred_fallthru
    _

</llo_original>
